<compile_context>
chip_gen: v5e
topology: v5e:2x2
jax: 0.10.0
libtpu: 0.0.40
codegen_flags: <defaults>
</compile_context>

<pallas_src>
import functools

import jax
import jax.numpy as jnp
from jax.experimental import pallas as pl
from jax.experimental.pallas import tpu as pltpu


def _round_up(x, m):
    return (x + m - 1) // m * m


def _choose_tm(batch, tm_target):
    """Pick a batch tile: as big as possible, multiple of 8, >= 2 grid steps."""
    tm = min(tm_target, _round_up(batch, 8))
    tm = max(8, _round_up(tm, 8))
    # Keep at least 2 grid steps when the batch allows it (v7x dual TC).
    while tm > 8 and _round_up(batch, tm) // tm < 2:
        tm = max(8, _round_up(tm // 2, 8))
    return tm


def _make_mlp_kernel(n_layers, add2last):
    """Fused kernel: x @ W1 + b1 -> ReLU -> ... -> @ Wn + bn [-> ReLU]."""

    def kernel(*refs):
        x_ref = refs[0]
        o_ref = refs[-1]
        param_refs = refs[1:-1]  # (w1, b1, w2, b2, ..., wn, bn)

        h = x_ref[...]
        for i in range(n_layers):
            w = param_refs[2 * i][...]
            b = param_refs[2 * i + 1][...]
            # Feed MXU in the operand dtype (bf16 stays bf16); accumulate in f32.
            acc = jnp.dot(h.astype(w.dtype), w,
                          preferred_element_type=jnp.float32)
            acc = acc + b.astype(jnp.float32)  # (1, d) broadcast, f32 VPU
            if add2last or i < n_layers - 1:
                acc = jnp.maximum(acc, 0.0)  # ReLU (default nonlinearity)
            h = acc
        o_ref[...] = h.astype(o_ref.dtype)

    return kernel


def feed_forward_block(x, weights, biases, *, add2last=False, tm=512):
    """Pallas implementation of OurFeedForwardBlock.forward (eval mode).

    x:       [B, layer_dims[0]]
    weights: list of [d_in, d_out] arrays (transpose of torch's [out, in])
    biases:  list of [1, d_out] arrays
    """
    n_layers = len(weights)
    if n_layers == 0:  # empty layer_dims -> NOOP block
        return x

    B, d_in = x.shape
    d_out = weights[-1].shape[1]

    # ---- lane-dense padding of the feature dims (multiples of 128) ----------
    # Input feature dim is left as-is (block covers the full dim; padding it
    # would only inflate X HBM traffic). Hidden/output dims are zero-padded.
    out_pads = [_round_up(w.shape[1], 128) for w in weights]
    in_pads = [d_in] + out_pads[:-1]
    w_pad, b_pad = [], []
    for w, b, ip, op in zip(weights, biases, in_pads, out_pads):
        w_pad.append(jnp.pad(w, ((0, ip - w.shape[0]), (0, op - w.shape[1]))))
        b_pad.append(jnp.pad(b, ((0, 0), (0, op - b.shape[1]))))
    d_out_pad = out_pads[-1]

    # ---- batch tiling / padding ---------------------------------------------
    tm = _choose_tm(B, tm)
    B_pad = _round_up(B, tm)
    x_pad = jnp.pad(x, ((0, B_pad - B), (0, 0))) if B_pad != B else x

    # ---- specs ---------------------------------------------------------------
    in_specs = [pl.BlockSpec((tm, d_in), lambda i: (i, 0))]
    args = [x_pad]
    for w, b in zip(w_pad, b_pad):
        # Weights / biases are kept fully resident in VMEM (constant index_map).
        in_specs.append(pl.BlockSpec(w.shape, lambda i: (0, 0)))
        in_specs.append(pl.BlockSpec(b.shape, lambda i: (0, 0)))
        args += [w, b]
    out_spec = pl.BlockSpec((tm, d_out_pad), lambda i: (i, 0))

    # ---- explicit VMEM budget (pipeline buffers + weights + intermediates) ---
    x_isz = jnp.dtype(x.dtype).itemsize
    est = 2 * tm * d_in * x_isz + 2 * tm * d_out_pad * x_isz
    for w, b in zip(w_pad, b_pad):
        est += 2 * (w.size * w.dtype.itemsize + b.size * b.dtype.itemsize)
    for op in out_pads:
        est += tm * op * 4  # f32 intermediates
    vmem_limit = int(min(64 << 20, max(32 << 20, 2 * est)))

    out_full = pl.pallas_call(
        _make_mlp_kernel(n_layers, add2last),
        out_shape=jax.ShapeDtypeStruct((B_pad, d_out_pad), x.dtype),
        grid_spec=pl.GridSpec(
            grid=(B_pad // tm,),
            in_specs=in_specs,
            out_specs=out_spec,
        ),
        compiler_params=pltpu.CompilerParams(
            dimension_semantics=("parallel",),
            vmem_limit_bytes=vmem_limit,
        ),
    )(*args)

    return out_full[:B, :d_out]


def init_params(layer_dims, key):
    """Deterministic parameter init (shapes match nn.Linear per layer_dims)."""
    weights, biases = [], []
    for i in range(len(layer_dims) - 1):
        d_in, d_out = layer_dims[i], layer_dims[i + 1]
        key, kw, kb = jax.random.split(key, 3)
        bound = 1.0 / jnp.sqrt(d_in)
        # stored as [in, out] (transpose of torch's [out, in])
        w = jax.random.uniform(kw, (d_in, d_out), jnp.float32, -bound, bound)
        b = jax.random.uniform(kb, (1, d_out), jnp.float32, -bound, bound)
        weights.append(w)
        biases.append(b)
    return weights, biases


def reference_forward(x, weights, biases, add2last=False):
    """Pure-JAX reference of the PyTorch forward pass."""
    h = x
    n = len(weights)
    for i, (w, b) in enumerate(zip(weights, biases)):
        h = h @ w + b
        if add2last or i < n - 1:
            h = jnp.maximum(h, 0.0)
    return h


if __name__ == "__main__":
    layer_dims = [32, 64, 48, 16]  # input, hidden, hidden, output
    batch = 256

    key = jax.random.PRNGKey(0)
    key, kx = jax.random.split(key)
    x = jax.random.normal(kx, (batch, layer_dims[0]), jnp.float32)
    weights, biases = init_params(layer_dims, key)

    ref = reference_forward(x, weights, biases, add2last=False)

    # f32 path
    out = feed_forward_block(x, weights, biases, add2last=False, tm=512)
    out = jax.block_until_ready(out)
    assert out.shape == (batch, layer_dims[-1])
    assert jnp.allclose(out, ref, atol=1e-4, rtol=1e-4), "f32 mismatch vs reference"

    # bf16-operand / f32-accumulate path (MXU-native on v6e/v7x)
    x_bf = x.astype(jnp.bfloat16)
    w_bf = [w.astype(jnp.bfloat16) for w in weights]
    b_bf = [b.astype(jnp.bfloat16) for b in biases]
    out_bf = feed_forward_block(x_bf, w_bf, b_bf, add2last=False, tm=512)
    out_bf = jax.block_until_ready(out_bf)
    assert out_bf.shape == (batch, layer_dims[-1])
    assert jnp.allclose(out_bf.astype(jnp.float32), ref, atol=1e-1, rtol=1e-1), \
        "bf16 mismatch vs reference"

    print("KERNEL_OK")
</pallas_src>

<mosaic_0001>
module attributes {stable_mosaic.version = 11 : i64} {
  func.func @kernel(%arg0: i32, %arg1: memref<128x32xf32, #tpu.memory_space<vmem>>, %arg2: memref<32x128xf32, #tpu.memory_space<vmem>>, %arg3: memref<1x128xf32, #tpu.memory_space<vmem>>, %arg4: memref<128x128xf32, #tpu.memory_space<vmem>>, %arg5: memref<1x128xf32, #tpu.memory_space<vmem>>, %arg6: memref<128x128xf32, #tpu.memory_space<vmem>>, %arg7: memref<1x128xf32, #tpu.memory_space<vmem>>, %arg8: memref<128x128xf32, #tpu.memory_space<vmem>>) attributes {dimension_semantics = [#tpu.dimension_semantics<parallel>], iteration_bounds = array<i64: 2>, scalar_prefetch = 0 : i64, scratch_operands = 0 : i64, tpu.core_type = #tpu.core_type<tc>, window_params = [{transform_indices = @transform_0, window_bounds = array<i64: 128, 32>}, {pipeline_mode = #tpu.pipeline_mode<synchronous>, transform_indices = @transform_1, window_bounds = array<i64: 32, 128>}, {pipeline_mode = #tpu.pipeline_mode<synchronous>, transform_indices = @transform_2, window_bounds = array<i64: 1, 128>}, {pipeline_mode = #tpu.pipeline_mode<synchronous>, transform_indices = @transform_3, window_bounds = array<i64: 128, 128>}, {pipeline_mode = #tpu.pipeline_mode<synchronous>, transform_indices = @transform_4, window_bounds = array<i64: 1, 128>}, {pipeline_mode = #tpu.pipeline_mode<synchronous>, transform_indices = @transform_5, window_bounds = array<i64: 128, 128>}, {pipeline_mode = #tpu.pipeline_mode<synchronous>, transform_indices = @transform_6, window_bounds = array<i64: 1, 128>}, {transform_indices = @transform_7, window_bounds = array<i64: 128, 128>}]} {
    %c0 = arith.constant 0 : index
    %c0_0 = arith.constant 0 : index
    %0 = vector.load %arg1[%c0, %c0_0] : memref<128x32xf32, #tpu.memory_space<vmem>>, vector<128x32xf32>
    %c0_1 = arith.constant 0 : index
    %c0_2 = arith.constant 0 : index
    %1 = vector.load %arg2[%c0_1, %c0_2] : memref<32x128xf32, #tpu.memory_space<vmem>>, vector<32x128xf32>
    %c0_3 = arith.constant 0 : index
    %c0_4 = arith.constant 0 : index
    %2 = vector.load %arg3[%c0_3, %c0_4] : memref<1x128xf32, #tpu.memory_space<vmem>>, vector<1x128xf32>
    %cst = arith.constant dense<0.000000e+00> : vector<128x128xf32>
    %3 = tpu.matmul %0, %1, %cst {dimension_numbers = #tpu.dot_dimension_numbers<[1], [0], [0], [1], [0, 0, 1, 1], [], []>} : vector<128x32xf32>, vector<32x128xf32>, vector<128x128xf32> -> vector<128x128xf32>
    %4 = vector.broadcast %2 : vector<1x128xf32> to vector<128x128xf32>
    %5 = arith.addf %3, %4 : vector<128x128xf32>
    %cst_5 = arith.constant 0.000000e+00 : f32
    %6 = vector.broadcast %cst_5 : f32 to vector<128x128xf32>
    %7 = arith.maximumf %5, %6 : vector<128x128xf32>
    %c0_6 = arith.constant 0 : index
    %c0_7 = arith.constant 0 : index
    %8 = vector.load %arg4[%c0_6, %c0_7] : memref<128x128xf32, #tpu.memory_space<vmem>>, vector<128x128xf32>
    %c0_8 = arith.constant 0 : index
    %c0_9 = arith.constant 0 : index
    %9 = vector.load %arg5[%c0_8, %c0_9] : memref<1x128xf32, #tpu.memory_space<vmem>>, vector<1x128xf32>
    %cst_10 = arith.constant dense<0.000000e+00> : vector<128x128xf32>
    %10 = tpu.matmul %7, %8, %cst_10 {dimension_numbers = #tpu.dot_dimension_numbers<[1], [0], [0], [1], [0, 0, 1, 1], [], []>} : vector<128x128xf32>, vector<128x128xf32>, vector<128x128xf32> -> vector<128x128xf32>
    %11 = vector.broadcast %9 : vector<1x128xf32> to vector<128x128xf32>
    %12 = arith.addf %10, %11 : vector<128x128xf32>
    %cst_11 = arith.constant 0.000000e+00 : f32
    %13 = vector.broadcast %cst_11 : f32 to vector<128x128xf32>
    %14 = arith.maximumf %12, %13 : vector<128x128xf32>
    %c0_12 = arith.constant 0 : index
    %c0_13 = arith.constant 0 : index
    %15 = vector.load %arg6[%c0_12, %c0_13] : memref<128x128xf32, #tpu.memory_space<vmem>>, vector<128x128xf32>
    %c0_14 = arith.constant 0 : index
    %c0_15 = arith.constant 0 : index
    %16 = vector.load %arg7[%c0_14, %c0_15] : memref<1x128xf32, #tpu.memory_space<vmem>>, vector<1x128xf32>
    %cst_16 = arith.constant dense<0.000000e+00> : vector<128x128xf32>
    %17 = tpu.matmul %14, %15, %cst_16 {dimension_numbers = #tpu.dot_dimension_numbers<[1], [0], [0], [1], [0, 0, 1, 1], [], []>} : vector<128x128xf32>, vector<128x128xf32>, vector<128x128xf32> -> vector<128x128xf32>
    %18 = vector.broadcast %16 : vector<1x128xf32> to vector<128x128xf32>
    %19 = arith.addf %17, %18 : vector<128x128xf32>
    %c0_17 = arith.constant 0 : index
    %c0_18 = arith.constant 0 : index
    %20 = vector.load %arg8[%c0_17, %c0_18] : memref<128x128xf32, #tpu.memory_space<vmem>>, vector<128x128xf32>
    tpu.vector_store %arg8[%c0_17, %c0_18], %19 {strides = array<i32>} : memref<128x128xf32, #tpu.memory_space<vmem>>, vector<128x128xf32>,
    return
  }
  func.func @transform_0(%arg0: i32) -> (i32, i32) {
    %c0_i32 = arith.constant 0 : i32
    %c0_i32_0 = arith.constant 0 : i32
    return %arg0, %c0_i32 : i32, i32
  }
  func.func @transform_1(%arg0: i32) -> (i32, i32) {
    %c0_i32 = arith.constant 0 : i32
    %c0_i32_0 = arith.constant 0 : i32
    %c0_i32_1 = arith.constant 0 : i32
    return %c0_i32, %c0_i32_0 : i32, i32
  }
  func.func @transform_2(%arg0: i32) -> (i32, i32) {
    %c0_i32 = arith.constant 0 : i32
    %c0_i32_0 = arith.constant 0 : i32
    %c0_i32_1 = arith.constant 0 : i32
    return %c0_i32, %c0_i32_0 : i32, i32
  }
  func.func @transform_3(%arg0: i32) -> (i32, i32) {
    %c0_i32 = arith.constant 0 : i32
    %c0_i32_0 = arith.constant 0 : i32
    %c0_i32_1 = arith.constant 0 : i32
    return %c0_i32, %c0_i32_0 : i32, i32
  }
  func.func @transform_4(%arg0: i32) -> (i32, i32) {
    %c0_i32 = arith.constant 0 : i32
    %c0_i32_0 = arith.constant 0 : i32
    %c0_i32_1 = arith.constant 0 : i32
    return %c0_i32, %c0_i32_0 : i32, i32
  }
  func.func @transform_5(%arg0: i32) -> (i32, i32) {
    %c0_i32 = arith.constant 0 : i32
    %c0_i32_0 = arith.constant 0 : i32
    %c0_i32_1 = arith.constant 0 : i32
    return %c0_i32, %c0_i32_0 : i32, i32
  }
  func.func @transform_6(%arg0: i32) -> (i32, i32) {
    %c0_i32 = arith.constant 0 : i32
    %c0_i32_0 = arith.constant 0 : i32
    %c0_i32_1 = arith.constant 0 : i32
    return %c0_i32, %c0_i32_0 : i32, i32
  }
  func.func @transform_7(%arg0: i32) -> (i32, i32) {
    %c0_i32 = arith.constant 0 : i32
    %c0_i32_0 = arith.constant 0 : i32
    return %arg0, %c0_i32 : i32, i32
  }
}

</mosaic_0001>

<llo_original>
// kernel: tpu_custom_call.1
$region0: #{tpu_custom_call.1}
  #allocation0 [shape = 'u32[]', space=smem, size = 0x4, offset = 0x4, fixed_abs, tag = 'smem constant byte address 0x4 - core index']
  #allocation1 [shape = 'u32[72,128]{1,0:T(1,128)}', space=vmem, size = 0x9000, scoped, tag = 'internal scratch']
  %s0 = inlined_call_operand.vmem [shape: f32[256,32], index: 0, kind: input, shape index: {}]
  %s1 = inlined_call_operand.vmem [shape: f32[32,128], index: 1, kind: input, shape index: {}]
  %s2 = inlined_call_operand.vmem [shape: f32[1,128], index: 2, kind: input, shape index: {}]
  %s3 = inlined_call_operand.vmem [shape: f32[128,128], index: 3, kind: input, shape index: {}]
  %s4 = inlined_call_operand.vmem [shape: f32[1,128], index: 4, kind: input, shape index: {}]
  %s5 = inlined_call_operand.vmem [shape: f32[128,128], index: 5, kind: input, shape index: {}]
  %s6 = inlined_call_operand.vmem [shape: f32[1,128], index: 6, kind: input, shape index: {}]
  %s7 = inlined_call_operand.hbm [shape: f32[256,128], index: 7, kind: output, shape index: {}]
  %s8 = sld [smem:[#allocation0]]
  $region61: #{tpu_custom_call.1} parent=0
    _
  %s10 = ssub.s32 1, %s8
  %s11 = scalar_select 0, %s10, %s8
  $region1: #{tpu_custom_call.1} parent=0
    #allocation2 [shape = 'u8[131072]{0}', space=vmem, size = 0x20000, scoped, tag = 'output window, operand 0']
    #allocation3 [shape = 's32[2]{0}', space=sflag, size = 0x8, scoped, tag = 'scoped memory for tpu_custom_call.1']
    %12 = vsyncpa [#allocation3], 0
    %s13 = scalar_lea.sflag [#allocation3], 1
    %14 = vsyncpa %s13, 0
    loop: start=0, step=1, limit=4
    $region2: #{tpu_custom_call.1} parent=1 // loop_pre_header
      _
    $region3: #{tpu_custom_call.1} parent=1 // loop_header
      %s16 = sphi 0, %s20
      %p17 = scmp.ge.s32.totalorder %s16, 4
      %s26 = sphi 0, %s28
      %s29 = sphi 0, %s26
      %s30 = sphi 0, %s29
      %s46 = sphi 0, %s30
      %s50 = sphi 0, %s50
      %s52 = sphi 0, %s50
      %s53 = sphi 0, %s52
      %s67 = sphi 0, %s53
      %s71 = sphi 0, %s71
      %s73 = sphi 0, %s71
      %s74 = sphi 0, %s73
      %s88 = sphi 0, %s74
      %s92 = sphi 0, %s92
      %s94 = sphi 0, %s92
      %s95 = sphi 0, %s94
      %s109 = sphi 0, %s95
      %s113 = sphi 0, %s113
      %s115 = sphi 0, %s113
      %s116 = sphi 0, %s115
      %s130 = sphi 0, %s116
      %s134 = sphi 0, %s134
      %s136 = sphi 0, %s134
      %s137 = sphi 0, %s136
      %s151 = sphi 0, %s137
      %s155 = sphi 0, %s155
      %s157 = sphi 0, %s155
      %s158 = sphi 0, %s157
      %s172 = sphi 0, %s158
      %s178 = sphi 0, %s180
      %s181 = sphi 0, %s178
      %s182 = sphi 0, %s181
      %s198 = sphi 0, %s182
    $region4: #{tpu_custom_call.1} parent=1 // loop_header_branch
      %19 = sbr.rel (%p17) target = $region8
    $region5: #{tpu_custom_call.1} parent=1 // loop_body
      %s21 = ssub.s32 %s16, 1
      %s22 = ssub.s32 %s16, 2
      %s23 = sadd.s32 %s16, 1
      %s24 = ssub.s32 %s16, %s23
      %p25 = scmp.eq.s32.totalorder %s24, 0
      %s27 = sadd.s32 %s26, 1
      %s28 = scalar_select %p25, %s26, %s27
      %p31 = pneg %p25
      %p32 = scmp.eq.s32.totalorder %s16, 1
      %p33 = por %p31, %p32
      %p34 = scmp.ne.s32.totalorder %s26, %s29
      %p35 = scmp.eq.s32.totalorder %s16, 0
      %p36 = por %p34, %p35
      %p37 = scmp.ne.s32.totalorder %s26, %s29
      %p38 = scmp.eq.s32.totalorder %s21, 1
      %p39 = por %p37, %p38
      %p40 = scmp.ne.s32.totalorder %s29, %s30
      %p41 = scmp.eq.s32.totalorder %s21, 0
      %p42 = por %p40, %p41
      %p43 = scmp.ne.s32.totalorder %s29, %s30
      %p44 = scmp.eq.s32.totalorder %s22, 1
      %p45 = por %p43, %p44
      %p47 = scmp.ne.s32.totalorder %s30, %s46
      %p48 = scmp.eq.s32.totalorder %s22, 0
      %p49 = por %p47, %p48
      %s51 = sadd.s32 %s50, 1
      %p54 = scmp.eq.s32.totalorder %s16, 1
      %p55 = scmp.ne.s32.totalorder %s50, %s52
      %p56 = scmp.eq.s32.totalorder %s16, 0
      %p57 = por %p55, %p56
      %p58 = scmp.ne.s32.totalorder %s50, %s52
      %p59 = scmp.eq.s32.totalorder %s21, 1
      %p60 = por %p58, %p59
      %p61 = scmp.ne.s32.totalorder %s52, %s53
      %p62 = scmp.eq.s32.totalorder %s21, 0
      %p63 = por %p61, %p62
      %p64 = scmp.ne.s32.totalorder %s52, %s53
      %p65 = scmp.eq.s32.totalorder %s22, 1
      %p66 = por %p64, %p65
      %p68 = scmp.ne.s32.totalorder %s53, %s67
      %p69 = scmp.eq.s32.totalorder %s22, 0
      %p70 = por %p68, %p69
      %s72 = sadd.s32 %s71, 1
      %p75 = scmp.eq.s32.totalorder %s16, 1
      %p76 = scmp.ne.s32.totalorder %s71, %s73
      %p77 = scmp.eq.s32.totalorder %s16, 0
      %p78 = por %p76, %p77
      %p79 = scmp.ne.s32.totalorder %s71, %s73
      %p80 = scmp.eq.s32.totalorder %s21, 1
      %p81 = por %p79, %p80
      %p82 = scmp.ne.s32.totalorder %s73, %s74
      %p83 = scmp.eq.s32.totalorder %s21, 0
      %p84 = por %p82, %p83
      %p85 = scmp.ne.s32.totalorder %s73, %s74
      %p86 = scmp.eq.s32.totalorder %s22, 1
      %p87 = por %p85, %p86
      %p89 = scmp.ne.s32.totalorder %s74, %s88
      %p90 = scmp.eq.s32.totalorder %s22, 0
      %p91 = por %p89, %p90
      %s93 = sadd.s32 %s92, 1
      %p96 = scmp.eq.s32.totalorder %s16, 1
      %p97 = scmp.ne.s32.totalorder %s92, %s94
      %p98 = scmp.eq.s32.totalorder %s16, 0
      %p99 = por %p97, %p98
      %p100 = scmp.ne.s32.totalorder %s92, %s94
      %p101 = scmp.eq.s32.totalorder %s21, 1
      %p102 = por %p100, %p101
      %p103 = scmp.ne.s32.totalorder %s94, %s95
      %p104 = scmp.eq.s32.totalorder %s21, 0
      %p105 = por %p103, %p104
      %p106 = scmp.ne.s32.totalorder %s94, %s95
      %p107 = scmp.eq.s32.totalorder %s22, 1
      %p108 = por %p106, %p107
      %p110 = scmp.ne.s32.totalorder %s95, %s109
      %p111 = scmp.eq.s32.totalorder %s22, 0
      %p112 = por %p110, %p111
      %s114 = sadd.s32 %s113, 1
      %p117 = scmp.eq.s32.totalorder %s16, 1
      %p118 = scmp.ne.s32.totalorder %s113, %s115
      %p119 = scmp.eq.s32.totalorder %s16, 0
      %p120 = por %p118, %p119
      %p121 = scmp.ne.s32.totalorder %s113, %s115
      %p122 = scmp.eq.s32.totalorder %s21, 1
      %p123 = por %p121, %p122
      %p124 = scmp.ne.s32.totalorder %s115, %s116
      %p125 = scmp.eq.s32.totalorder %s21, 0
      %p126 = por %p124, %p125
      %p127 = scmp.ne.s32.totalorder %s115, %s116
      %p128 = scmp.eq.s32.totalorder %s22, 1
      %p129 = por %p127, %p128
      %p131 = scmp.ne.s32.totalorder %s116, %s130
      %p132 = scmp.eq.s32.totalorder %s22, 0
      %p133 = por %p131, %p132
      %s135 = sadd.s32 %s134, 1
      %p138 = scmp.eq.s32.totalorder %s16, 1
      %p139 = scmp.ne.s32.totalorder %s134, %s136
      %p140 = scmp.eq.s32.totalorder %s16, 0
      %p141 = por %p139, %p140
      %p142 = scmp.ne.s32.totalorder %s134, %s136
      %p143 = scmp.eq.s32.totalorder %s21, 1
      %p144 = por %p142, %p143
      %p145 = scmp.ne.s32.totalorder %s136, %s137
      %p146 = scmp.eq.s32.totalorder %s21, 0
      %p147 = por %p145, %p146
      %p148 = scmp.ne.s32.totalorder %s136, %s137
      %p149 = scmp.eq.s32.totalorder %s22, 1
      %p150 = por %p148, %p149
      %p152 = scmp.ne.s32.totalorder %s137, %s151
      %p153 = scmp.eq.s32.totalorder %s22, 0
      %p154 = por %p152, %p153
      %s156 = sadd.s32 %s155, 1
      %p159 = scmp.eq.s32.totalorder %s16, 1
      %p160 = scmp.ne.s32.totalorder %s155, %s157
      %p161 = scmp.eq.s32.totalorder %s16, 0
      %p162 = por %p160, %p161
      %p163 = scmp.ne.s32.totalorder %s155, %s157
      %p164 = scmp.eq.s32.totalorder %s21, 1
      %p165 = por %p163, %p164
      %p166 = scmp.ne.s32.totalorder %s157, %s158
      %p167 = scmp.eq.s32.totalorder %s21, 0
      %p168 = por %p166, %p167
      %p169 = scmp.ne.s32.totalorder %s157, %s158
      %p170 = scmp.eq.s32.totalorder %s22, 1
      %p171 = por %p169, %p170
      %p173 = scmp.ne.s32.totalorder %s158, %s172
      %p174 = scmp.eq.s32.totalorder %s22, 0
      %p175 = por %p173, %p174
      %s176 = ssub.s32 %s16, %s23
      %p177 = scmp.eq.s32.totalorder %s176, 0
      %s179 = sadd.s32 %s178, 1
      %s180 = scalar_select %p177, %s178, %s179
      %p183 = pneg %p177
      %p184 = scmp.eq.s32.totalorder %s16, 1
      %p185 = por %p183, %p184
      %p186 = scmp.ne.s32.totalorder %s178, %s181
      %p187 = scmp.eq.s32.totalorder %s16, 0
      %p188 = por %p186, %p187
      %p189 = scmp.ne.s32.totalorder %s178, %s181
      %p190 = scmp.eq.s32.totalorder %s21, 1
      %p191 = por %p189, %p190
      %p192 = scmp.ne.s32.totalorder %s181, %s182
      %p193 = scmp.eq.s32.totalorder %s21, 0
      %p194 = por %p192, %p193
      %p195 = scmp.ne.s32.totalorder %s181, %s182
      %p196 = scmp.eq.s32.totalorder %s22, 1
      %p197 = por %p195, %p196
      %p199 = scmp.ne.s32.totalorder %s182, %s198
      %p200 = scmp.eq.s32.totalorder %s22, 0
      %p201 = por %p199, %p200
      %p202 = scmp.le.s32.totalorder 1, %s16
      %p203 = scmp.lt.s32.totalorder %s16, 3
      %p204 = pnand %p202, %p203
      %p205 = pneg %p204
      // Predicated region
      $region9: #{tpu_custom_call.1} parent=5 // pred_check
        _
      $region10: #{tpu_custom_call.1} parent=5 // pred_check_branch
        %207 = sbr.rel (%p204) target = $region12
      $region11: #{tpu_custom_call.1} parent=5 // pred_region
        %s208 = ssub.s32 %s16, 1
        // Predicated region
        $region13: #{tpu_custom_call.1} parent=11 // pred_check
          %p209 = pneg %p63
        $region14: #{tpu_custom_call.1} parent=11 // pred_check_branch
          %211 = sbr.rel (%p209) target = $region16
        $region15: #{tpu_custom_call.1} parent=11 // pred_region
          _
        $region16: #{tpu_custom_call.1} parent=11 // pred_fallthru
          _
        // Predicated region
        $region17: #{tpu_custom_call.1} parent=11 // pred_check
          %p212 = pneg %p84
        $region18: #{tpu_custom_call.1} parent=11 // pred_check_branch
          %214 = sbr.rel (%p212) target = $region20
        $region19: #{tpu_custom_call.1} parent=11 // pred_region
          _
        $region20: #{tpu_custom_call.1} parent=11 // pred_fallthru
          _
        // Predicated region
        $region21: #{tpu_custom_call.1} parent=11 // pred_check
          %p215 = pneg %p105
        $region22: #{tpu_custom_call.1} parent=11 // pred_check_branch
          %217 = sbr.rel (%p215) target = $region24
        $region23: #{tpu_custom_call.1} parent=11 // pred_region
          _
        $region24: #{tpu_custom_call.1} parent=11 // pred_fallthru
          _
        // Predicated region
        $region25: #{tpu_custom_call.1} parent=11 // pred_check
          %p218 = pneg %p126
        $region26: #{tpu_custom_call.1} parent=11 // pred_check_branch
          %220 = sbr.rel (%p218) target = $region28
        $region27: #{tpu_custom_call.1} parent=11 // pred_region
          _
        $region28: #{tpu_custom_call.1} parent=11 // pred_fallthru
          _
        // Predicated region
        $region29: #{tpu_custom_call.1} parent=11 // pred_check
          %p221 = pneg %p147
        $region30: #{tpu_custom_call.1} parent=11 // pred_check_branch
          %223 = sbr.rel (%p221) target = $region32
        $region31: #{tpu_custom_call.1} parent=11 // pred_region
          _
        $region32: #{tpu_custom_call.1} parent=11 // pred_fallthru
          _
        // Predicated region
        $region33: #{tpu_custom_call.1} parent=11 // pred_check
          %p224 = pneg %p168
        $region34: #{tpu_custom_call.1} parent=11 // pred_check_branch
          %226 = sbr.rel (%p224) target = $region36
        $region35: #{tpu_custom_call.1} parent=11 // pred_region
          _
        $region36: #{tpu_custom_call.1} parent=11 // pred_fallthru
          _
      $region12: #{tpu_custom_call.1} parent=5 // pred_fallthru
        _
      %p227 = scmp.lt.s32.totalorder %s16, 2
      // Predicated region
      $region37: #{tpu_custom_call.1} parent=5 // pred_check
        %p228 = pneg %p227
      $region38: #{tpu_custom_call.1} parent=5 // pred_check_branch
        %230 = sbr.rel (%p228) target = $region40
      $region39: #{tpu_custom_call.1} parent=5 // pred_region
        // Predicated region
        $region41: #{tpu_custom_call.1} parent=39 // pred_check
          %p231 = pneg %p36
        $region42: #{tpu_custom_call.1} parent=39 // pred_check_branch
          %233 = sbr.rel (%p231) target = $region44
        $region43: #{tpu_custom_call.1} parent=39 // pred_region
          %s234 = smul.u32 16, %s16
          %p235 = scmp.lt.s32.totalorder %s234, 31
          %s236 = scalar_select %p235, %s234, 31
          %s237 = smul.addr %s236, 8
          %s238 = scalar_lea.vmem %s0, %s237
          %s239 = smul.u32 16, %s16
        $region44: #{tpu_custom_call.1} parent=39 // pred_fallthru
          _
      $region40: #{tpu_custom_call.1} parent=5 // pred_fallthru
        _
      %p240 = scmp.le.s32.totalorder 1, %s16
      %p241 = scmp.lt.s32.totalorder %s16, 3
      %p242 = pnand %p240, %p241
      %p243 = pneg %p242
      // Predicated region
      $region45: #{tpu_custom_call.1} parent=5 // pred_check
        _
      $region46: #{tpu_custom_call.1} parent=5 // pred_check_branch
        %245 = sbr.rel (%p242) target = $region48
      $region47: #{tpu_custom_call.1} parent=5 // pred_region
        %s246 = ssub.s32 %s16, 1
        %s247 = smul.u32 16, %s21
        %p248 = scmp.lt.s32.totalorder %s247, 31
        %s249 = scalar_select %p248, %s247, 31
        %s250 = smul.addr %s249, 8
        %s251 = scalar_lea.vmem %s0, %s250
        %p252 = pneg %p42
        %p253 = pneg %p39
        %p254 = pneg %p63
        %p255 = pneg %p60
        %p256 = pneg %p84
        %p257 = pneg %p81
        %p258 = pneg %p105
        %p259 = pneg %p102
        %p260 = pneg %p126
        %p261 = pneg %p123
        %p262 = pneg %p147
        %p263 = pneg %p144
        %p264 = pneg %p168
        %p265 = pneg %p165
        %p266 = pneg %p194
        %p267 = pneg %p191
        %s268 = sand.u32 %s181, 1
        %s269 = scalar_lea.sflag [#allocation3], %s268
        %s270 = sand.u32 %s181, 1
        %s271 = smul.addr %s270, 128
        %s272 = scalar_lea.vmem [#allocation2], %s271
        %s273 = smul.u32 16, %s21
        %p274 = scmp.lt.s32.totalorder %s273, 31
        %s275 = scalar_select %p274, %s273, 31
        %s276 = smul.addr %s275, 8
        %s277 = scalar_lea.vmem %s0, %s276
        %s278 = smul.u32 16, %s21
        %s279 = smul.u32 16, %s21
        %v280 = vld [vmem:[%s277] sm:$0xff]
        %v281 = vld [vmem:[%s277 + $0x8] sm:$0xff]
        %v282 = vld [vmem:[%s277 + $0x10] sm:$0xff]
        %v283 = vld [vmem:[%s277 + $0x18] sm:$0xff]
        %v284 = vld [vmem:[%s277 + $0x20] sm:$0xff]
        %v285 = vld [vmem:[%s277 + $0x28] sm:$0xff]
        %v286 = vld [vmem:[%s277 + $0x30] sm:$0xff]
        %v287 = vld [vmem:[%s277 + $0x38] sm:$0xff]
        %v288 = vld [vmem:[%s277 + $0x40] sm:$0xff]
        %v289 = vld [vmem:[%s277 + $0x48] sm:$0xff]
        %v290 = vld [vmem:[%s277 + $0x50] sm:$0xff]
        %v291 = vld [vmem:[%s277 + $0x58] sm:$0xff]
        %v292 = vld [vmem:[%s277 + $0x60] sm:$0xff]
        %v293 = vld [vmem:[%s277 + $0x68] sm:$0xff]
        %v294 = vld [vmem:[%s277 + $0x70] sm:$0xff]
        %v295 = vld [vmem:[%s277 + $0x78] sm:$0xff]
        %v296 = vld [vmem:[%s1] sm:$0xff]
        %v297 = vld [vmem:[%s1 + $0x8] sm:$0xff]
        %v298 = vld [vmem:[%s1 + $0x10] sm:$0xff]
        %v299 = vld [vmem:[%s1 + $0x18] sm:$0xff]
        %v300 = vld [vmem:[%s2] sm:$0x1]
        %v302 = vperm.slane %v300, 0
        %vm304 = vcmask 261120
        %v306 = vsel %vm304, %v280, 0
        %v309 = vsel %vm304, %v281, 0
        %v312 = vsel %vm304, %v282, 0
        %v315 = vsel %vm304, %v283, 0
        %v318 = vsel %vm304, %v284, 0
        %v321 = vsel %vm304, %v285, 0
        %v324 = vsel %vm304, %v286, 0
        %v327 = vsel %vm304, %v287, 0
        %v330 = vsel %vm304, %v288, 0
        %v333 = vsel %vm304, %v289, 0
        %v336 = vsel %vm304, %v290, 0
        %v339 = vsel %vm304, %v291, 0
        %v342 = vsel %vm304, %v292, 0
        %v345 = vsel %vm304, %v293, 0
        %v348 = vsel %vm304, %v294, 0
        %v351 = vsel %vm304, %v295, 0
        %353 = vmatpush.msra.mxu0 0.0
        %354 = vmatpush.msra.mxu0 0.0
        %355 = vmatpush.msra.mxu0 0.0
        %356 = vmatpush.msra.mxu0 0.0
        %357 = vmatpush.msra.mxu0 0.0
        %358 = vmatpush.msra.mxu0 0.0
        %359 = vmatpush.msra.mxu0 0.0
        %360 = vmatpush.msra.mxu0 0.0
        %361 = vmatpush.msra.mxu0 0.0
        %362 = vmatpush.msra.mxu0 0.0
        %363 = vmatpush.msra.mxu0 0.0
        %364 = vmatpush.msra.mxu0 0.0
        %365 = vmatpush.msra.mxu0 %v299
        %366 = vmatpush.msra.mxu0 %v298
        %367 = vmatpush.msra.mxu0 %v297
        %368 = vmatpush.msra.mxu0 %v296
        %369 = vmatmul.f32.gmra.mxu0 %v306
        %v370 = vpop.f32.mrf.mxu0
        %v371 = vadd.f32 %v302, %v370
        %372 = vmatmul.f32.gmra.mxu0 %v309
        %v373 = vpop.f32.mrf.mxu0
        %v374 = vadd.f32 %v302, %v373
        %375 = vmatmul.f32.gmra.mxu0 %v312
        %v376 = vpop.f32.mrf.mxu0
        %v377 = vadd.f32 %v302, %v376
        %378 = vmatmul.f32.gmra.mxu0 %v315
        %v379 = vpop.f32.mrf.mxu0
        %v380 = vadd.f32 %v302, %v379
        %381 = vmatmul.f32.gmra.mxu0 %v318
        %v382 = vpop.f32.mrf.mxu0
        %v383 = vadd.f32 %v302, %v382
        %384 = vmatmul.f32.gmra.mxu0 %v321
        %v385 = vpop.f32.mrf.mxu0
        %v386 = vadd.f32 %v302, %v385
        %387 = vmatmul.f32.gmra.mxu0 %v324
        %v388 = vpop.f32.mrf.mxu0
        %v389 = vadd.f32 %v302, %v388
        %390 = vmatmul.f32.gmra.mxu0 %v327
        %v391 = vpop.f32.mrf.mxu0
        %v392 = vadd.f32 %v302, %v391
        %393 = vmatmul.f32.gmra.mxu0 %v330
        %v394 = vpop.f32.mrf.mxu0
        %v395 = vadd.f32 %v302, %v394
        %396 = vmatmul.f32.gmra.mxu0 %v333
        %v397 = vpop.f32.mrf.mxu0
        %v398 = vadd.f32 %v302, %v397
        %399 = vmatmul.f32.gmra.mxu0 %v336
        %v400 = vpop.f32.mrf.mxu0
        %v401 = vadd.f32 %v302, %v400
        %402 = vmatmul.f32.gmra.mxu0 %v339
        %v403 = vpop.f32.mrf.mxu0
        %v404 = vadd.f32 %v302, %v403
        %405 = vmatmul.f32.gmra.mxu0 %v342
        %v406 = vpop.f32.mrf.mxu0
        %v407 = vadd.f32 %v302, %v406
        %408 = vmatmul.f32.gmra.mxu0 %v345
        %v409 = vpop.f32.mrf.mxu0
        %v410 = vadd.f32 %v302, %v409
        %411 = vmatmul.f32.gmra.mxu0 %v348
        %v412 = vpop.f32.mrf.mxu0
        %v413 = vadd.f32 %v302, %v412
        %414 = vmatmul.f32.gmra.mxu0 %v351
        %v415 = vpop.f32.mrf.mxu0
        %v416 = vadd.f32 %v302, %v415
        %417 = vdwg.mxu0
        %v418 = vmax.f32 %v371, 0.0
        %v419 = vmax.f32 %v374, 0.0
        %v420 = vmax.f32 %v377, 0.0
        %v421 = vmax.f32 %v380, 0.0
        %v422 = vmax.f32 %v383, 0.0
        %v423 = vmax.f32 %v386, 0.0
        %v424 = vmax.f32 %v389, 0.0
        %v425 = vmax.f32 %v392, 0.0
        %v426 = vmax.f32 %v395, 0.0
        %v427 = vmax.f32 %v398, 0.0
        %v428 = vmax.f32 %v401, 0.0
        %v429 = vmax.f32 %v404, 0.0
        %v430 = vmax.f32 %v407, 0.0
        %v431 = vmax.f32 %v410, 0.0
        %v432 = vmax.f32 %v413, 0.0
        %v433 = vmax.f32 %v416, 0.0
        %v434 = vld [vmem:[%s3] sm:$0xff]
        %v435 = vld [vmem:[%s3 + $0x8] sm:$0xff]
        %v436 = vld [vmem:[%s3 + $0x10] sm:$0xff]
        %v437 = vld [vmem:[%s3 + $0x18] sm:$0xff]
        %v438 = vld [vmem:[%s3 + $0x20] sm:$0xff]
        %v439 = vld [vmem:[%s3 + $0x28] sm:$0xff]
        %v440 = vld [vmem:[%s3 + $0x30] sm:$0xff]
        %v441 = vld [vmem:[%s3 + $0x38] sm:$0xff]
        %v442 = vld [vmem:[%s3 + $0x40] sm:$0xff]
        %v443 = vld [vmem:[%s3 + $0x48] sm:$0xff]
        %v444 = vld [vmem:[%s3 + $0x50] sm:$0xff]
        %v445 = vld [vmem:[%s3 + $0x58] sm:$0xff]
        %v446 = vld [vmem:[%s3 + $0x60] sm:$0xff]
        %v447 = vld [vmem:[%s3 + $0x68] sm:$0xff]
        %v448 = vld [vmem:[%s3 + $0x70] sm:$0xff]
        %v449 = vld [vmem:[%s3 + $0x78] sm:$0xff]
        %v450 = vld [vmem:[%s4] sm:$0x1]
        %v452 = vperm.slane %v450, 0
        %454 = vmatpush.msra.mxu0 %v449
        %455 = vmatpush.msra.mxu0 %v448
        %456 = vmatpush.msra.mxu0 %v447
        %457 = vmatpush.msra.mxu0 %v446
        %458 = vmatpush.msra.mxu0 %v445
        %459 = vmatpush.msra.mxu0 %v444
        %460 = vmatpush.msra.mxu0 %v443
        %461 = vmatpush.msra.mxu0 %v442
        %462 = vmatpush.msra.mxu0 %v441
        %463 = vmatpush.msra.mxu0 %v440
        %464 = vmatpush.msra.mxu0 %v439
        %465 = vmatpush.msra.mxu0 %v438
        %466 = vmatpush.msra.mxu0 %v437
        %467 = vmatpush.msra.mxu0 %v436
        %468 = vmatpush.msra.mxu0 %v435
        %469 = vmatpush.msra.mxu0 %v434
        %470 = vmatmul.f32.gmra.mxu0 %v418
        %v471 = vpop.f32.mrf.mxu0
        %v472 = vadd.f32 %v452, %v471
        %473 = vmatmul.f32.gmra.mxu0 %v419
        %v474 = vpop.f32.mrf.mxu0
        %v475 = vadd.f32 %v452, %v474
        %476 = vmatmul.f32.gmra.mxu0 %v420
        %v477 = vpop.f32.mrf.mxu0
        %v478 = vadd.f32 %v452, %v477
        %479 = vmatmul.f32.gmra.mxu0 %v421
        %v480 = vpop.f32.mrf.mxu0
        %v481 = vadd.f32 %v452, %v480
        %482 = vmatmul.f32.gmra.mxu0 %v422
        %v483 = vpop.f32.mrf.mxu0
        %v484 = vadd.f32 %v452, %v483
        %485 = vmatmul.f32.gmra.mxu0 %v423
        %v486 = vpop.f32.mrf.mxu0
        %v487 = vadd.f32 %v452, %v486
        %488 = vmatmul.f32.gmra.mxu0 %v424
        %v489 = vpop.f32.mrf.mxu0
        %v490 = vadd.f32 %v452, %v489
        %491 = vmatmul.f32.gmra.mxu0 %v425
        %v492 = vpop.f32.mrf.mxu0
        %v493 = vadd.f32 %v452, %v492
        %494 = vmatmul.f32.gmra.mxu0 %v426
        %v495 = vpop.f32.mrf.mxu0
        %v496 = vadd.f32 %v452, %v495
        %497 = vmatmul.f32.gmra.mxu0 %v427
        %v498 = vpop.f32.mrf.mxu0
        %v499 = vadd.f32 %v452, %v498
        %500 = vmatmul.f32.gmra.mxu0 %v428
        %v501 = vpop.f32.mrf.mxu0
        %v502 = vadd.f32 %v452, %v501
        %503 = vmatmul.f32.gmra.mxu0 %v429
        %v504 = vpop.f32.mrf.mxu0
        %v505 = vadd.f32 %v452, %v504
        %506 = vmatmul.f32.gmra.mxu0 %v430
        %v507 = vpop.f32.mrf.mxu0
        %v508 = vadd.f32 %v452, %v507
        %509 = vmatmul.f32.gmra.mxu0 %v431
        %v510 = vpop.f32.mrf.mxu0
        %v511 = vadd.f32 %v452, %v510
        %512 = vmatmul.f32.gmra.mxu0 %v432
        %v513 = vpop.f32.mrf.mxu0
        %v514 = vadd.f32 %v452, %v513
        %515 = vmatmul.f32.gmra.mxu0 %v433
        %v516 = vpop.f32.mrf.mxu0
        %v517 = vadd.f32 %v452, %v516
        %518 = vdwg.mxu0
        %v519 = vmax.f32 %v472, 0.0
        %v520 = vmax.f32 %v475, 0.0
        %v521 = vmax.f32 %v478, 0.0
        %v522 = vmax.f32 %v481, 0.0
        %v523 = vmax.f32 %v484, 0.0
        %v524 = vmax.f32 %v487, 0.0
        %v525 = vmax.f32 %v490, 0.0
        %v526 = vmax.f32 %v493, 0.0
        %v527 = vmax.f32 %v496, 0.0
        %v528 = vmax.f32 %v499, 0.0
        %v529 = vmax.f32 %v502, 0.0
        %v530 = vmax.f32 %v505, 0.0
        %v531 = vmax.f32 %v508, 0.0
        %v532 = vmax.f32 %v511, 0.0
        %v533 = vmax.f32 %v514, 0.0
        %v534 = vmax.f32 %v517, 0.0
        %v535 = vld [vmem:[%s5] sm:$0xff]
        %v536 = vld [vmem:[%s5 + $0x8] sm:$0xff]
        %v537 = vld [vmem:[%s5 + $0x10] sm:$0xff]
        %v538 = vld [vmem:[%s5 + $0x18] sm:$0xff]
        %v539 = vld [vmem:[%s5 + $0x20] sm:$0xff]
        %v540 = vld [vmem:[%s5 + $0x28] sm:$0xff]
        %v541 = vld [vmem:[%s5 + $0x30] sm:$0xff]
        %v542 = vld [vmem:[%s5 + $0x38] sm:$0xff]
        %v543 = vld [vmem:[%s5 + $0x40] sm:$0xff]
        %v544 = vld [vmem:[%s5 + $0x48] sm:$0xff]
        %v545 = vld [vmem:[%s5 + $0x50] sm:$0xff]
        %v546 = vld [vmem:[%s5 + $0x58] sm:$0xff]
        %v547 = vld [vmem:[%s5 + $0x60] sm:$0xff]
        %v548 = vld [vmem:[%s5 + $0x68] sm:$0xff]
        %v549 = vld [vmem:[%s5 + $0x70] sm:$0xff]
        %v550 = vld [vmem:[%s5 + $0x78] sm:$0xff]
        %v551 = vld [vmem:[%s6] sm:$0x1]
        %v553 = vperm.slane %v551, 0
        %555 = vmatpush.msra.mxu0 %v550
        %556 = vmatpush.msra.mxu0 %v549
        %557 = vmatpush.msra.mxu0 %v548
        %558 = vmatpush.msra.mxu0 %v547
        %559 = vmatpush.msra.mxu0 %v546
        %560 = vmatpush.msra.mxu0 %v545
        %561 = vmatpush.msra.mxu0 %v544
        %562 = vmatpush.msra.mxu0 %v543
        %563 = vmatpush.msra.mxu0 %v542
        %564 = vmatpush.msra.mxu0 %v541
        %565 = vmatpush.msra.mxu0 %v540
        %566 = vmatpush.msra.mxu0 %v539
        %567 = vmatpush.msra.mxu0 %v538
        %568 = vmatpush.msra.mxu0 %v537
        %569 = vmatpush.msra.mxu0 %v536
        %570 = vmatpush.msra.mxu0 %v535
        %571 = vmatmul.f32.gmra.mxu0 %v519
        %v572 = vpop.f32.mrf.mxu0
        %v573 = vadd.f32 %v553, %v572
        %574 = vmatmul.f32.gmra.mxu0 %v520
        %v575 = vpop.f32.mrf.mxu0
        %v576 = vadd.f32 %v553, %v575
        %577 = vmatmul.f32.gmra.mxu0 %v521
        %v578 = vpop.f32.mrf.mxu0
        %v579 = vadd.f32 %v553, %v578
        %580 = vmatmul.f32.gmra.mxu0 %v522
        %v581 = vpop.f32.mrf.mxu0
        %v582 = vadd.f32 %v553, %v581
        %583 = vmatmul.f32.gmra.mxu0 %v523
        %v584 = vpop.f32.mrf.mxu0
        %v585 = vadd.f32 %v553, %v584
        %586 = vmatmul.f32.gmra.mxu0 %v524
        %v587 = vpop.f32.mrf.mxu0
        %v588 = vadd.f32 %v553, %v587
        %589 = vmatmul.f32.gmra.mxu0 %v525
        %v590 = vpop.f32.mrf.mxu0
        %v591 = vadd.f32 %v553, %v590
        %592 = vmatmul.f32.gmra.mxu0 %v526
        %v593 = vpop.f32.mrf.mxu0
        %v594 = vadd.f32 %v553, %v593
        %595 = vmatmul.f32.gmra.mxu0 %v527
        %v596 = vpop.f32.mrf.mxu0
        %v597 = vadd.f32 %v553, %v596
        %598 = vmatmul.f32.gmra.mxu0 %v528
        %v599 = vpop.f32.mrf.mxu0
        %v600 = vadd.f32 %v553, %v599
        %601 = vmatmul.f32.gmra.mxu0 %v529
        %v602 = vpop.f32.mrf.mxu0
        %v603 = vadd.f32 %v553, %v602
        %604 = vmatmul.f32.gmra.mxu0 %v530
        %v605 = vpop.f32.mrf.mxu0
        %v606 = vadd.f32 %v553, %v605
        %607 = vmatmul.f32.gmra.mxu0 %v531
        %v608 = vpop.f32.mrf.mxu0
        %v609 = vadd.f32 %v553, %v608
        %610 = vmatmul.f32.gmra.mxu0 %v532
        %v611 = vpop.f32.mrf.mxu0
        %v612 = vadd.f32 %v553, %v611
        %613 = vmatmul.f32.gmra.mxu0 %v533
        %v614 = vpop.f32.mrf.mxu0
        %v615 = vadd.f32 %v553, %v614
        %616 = vmatmul.f32.gmra.mxu0 %v534
        %v617 = vpop.f32.mrf.mxu0
        %v618 = vadd.f32 %v553, %v617
        %619 = vdwg.mxu0
        %620 = vst [vmem:[%s272] sm:$0xff] %v573
        %621 = vst [vmem:[%s272 + $0x8] sm:$0xff] %v576
        %622 = vst [vmem:[%s272 + $0x10] sm:$0xff] %v579
        %623 = vst [vmem:[%s272 + $0x18] sm:$0xff] %v582
        %624 = vst [vmem:[%s272 + $0x20] sm:$0xff] %v585
        %625 = vst [vmem:[%s272 + $0x28] sm:$0xff] %v588
        %626 = vst [vmem:[%s272 + $0x30] sm:$0xff] %v591
        %627 = vst [vmem:[%s272 + $0x38] sm:$0xff] %v594
        %628 = vst [vmem:[%s272 + $0x40] sm:$0xff] %v597
        %629 = vst [vmem:[%s272 + $0x48] sm:$0xff] %v600
        %630 = vst [vmem:[%s272 + $0x50] sm:$0xff] %v603
        %631 = vst [vmem:[%s272 + $0x58] sm:$0xff] %v606
        %632 = vst [vmem:[%s272 + $0x60] sm:$0xff] %v609
        %633 = vst [vmem:[%s272 + $0x68] sm:$0xff] %v612
        %634 = vst [vmem:[%s272 + $0x70] sm:$0xff] %v615
        %635 = vst [vmem:[%s272 + $0x78] sm:$0xff] %v618
        %s636 = sand.u32 %s181, 1
        %s637 = scalar_lea.sflag [#allocation3], %s636
        %s638 = sand.u32 %s181, 1
        %s639 = smul.addr %s638, 128
        %s640 = scalar_lea.vmem [#allocation2], %s639
        // Predicated region
        $region49: #{tpu_custom_call.1} parent=47 // pred_check
          %p641 = pneg %p191
        $region50: #{tpu_custom_call.1} parent=47 // pred_check_branch
          %643 = sbr.rel (%p641) target = $region52
        $region51: #{tpu_custom_call.1} parent=47 // pred_region
          %s644 = smul.u32 16, %s21
          %646 = vsyncadd %s637, 0
          %s647 = smul.addr %s644, 8
          %s648 = scalar_lea.hbm %s7, %s647
          %s649 = sshll.u32 %s640, 4
          %s650 = int_to_ptr.vmem [resolvable:$true] %s649
          %s651 = sshll.u32 %s648, 4
          %s652 = int_to_ptr.hbm [resolvable:$true] %s651
          %657 = dma.vmem_to_hbm [thread:$0]  %s650, 2048, %s652, %s637, 128, 128, 8
        $region52: #{tpu_custom_call.1} parent=47 // pred_fallthru
          _
      $region48: #{tpu_custom_call.1} parent=5 // pred_fallthru
        _
      %p658 = scmp.le.s32.totalorder 2, %s16
      // Predicated region
      $region53: #{tpu_custom_call.1} parent=5 // pred_check
        %p659 = pneg %p658
      $region54: #{tpu_custom_call.1} parent=5 // pred_check_branch
        %661 = sbr.rel (%p659) target = $region56
      $region55: #{tpu_custom_call.1} parent=5 // pred_region
        %s662 = ssub.s32 %s16, 2
        // Predicated region
        $region57: #{tpu_custom_call.1} parent=55 // pred_check
          %p663 = pneg %p197
        $region58: #{tpu_custom_call.1} parent=55 // pred_check_branch
          %665 = sbr.rel (%p663) target = $region60
        $region59: #{tpu_custom_call.1} parent=55 // pred_region
          %s666 = sand.u32 %s182, 1
          %s667 = scalar_lea.sflag [#allocation3], %s666
          %s668 = sand.u32 %s182, 1
          %s669 = smul.addr %s668, 128
          %s670 = scalar_lea.vmem [#allocation2], %s669
          %672 = dma.done %s667, 2048
        $region60: #{tpu_custom_call.1} parent=55 // pred_fallthru
          _
      $region56: #{tpu_custom_call.1} parent=5 // pred_fallthru
        _
    $region6: #{tpu_custom_call.1} parent=1 // loop_footer
      %s20 = sadd.s32 1, %s16
    $region7: #{tpu_custom_call.1} parent=1 // loop_footer_branch
      %15 = sbr.rel target = $region3
    $region8: #{tpu_custom_call.1} parent=1 // loop_exit
      _
    %673 = vsyncpa [#allocation3], 1
    %s674 = scalar_lea.sflag [#allocation3], 1
    %675 = vsyncpa %s674, 1

</llo_original>
